<compile_context>
chip_gen: v6e
topology: v6e:2x2x1
jax: 0.10.0
libtpu: 0.0.40
codegen_flags: <defaults>
</compile_context>

<pallas_src>
import functools

import jax
import jax.numpy as jnp
from jax.experimental import pallas as pl
from jax.experimental.pallas import tpu as pltpu


def _round_up(x, m):
    return ((x + m - 1) // m) * m


def _linear_kernel(x_ref, w_ref, b_ref, o_ref):
    # One M-tile: (TM, K) @ (K, Np) + (1, Np); f32 accumulation on the MXU.
    acc = jnp.dot(x_ref[...], w_ref[...], preferred_element_type=jnp.float32)
    o_ref[...] = (acc + b_ref[...]).astype(o_ref.dtype)


def linear_pallas(x2d, w_kn, bias2d, *, tm=512):
    """x2d: (M, K), w_kn: (K, Np) lane-dense, bias2d: (1, Np) -> (M, Np)."""
    M, K = x2d.shape
    K2, Np = w_kn.shape
    assert K == K2 and Np % 128 == 0

    # Tile over M; pad M so every tile is full and sublane-aligned (mult of 8).
    if M <= tm:
        m_pad = _round_up(M, 8)
        tm = m_pad
    else:
        m_pad = _round_up(M, tm)
    if m_pad != M:
        x2d = jnp.pad(x2d, ((0, m_pad - M), (0, 0)))

    grid_m = m_pad // tm

    itemsize = jnp.dtype(x2d.dtype).itemsize
    cost = pl.CostEstimate(
        flops=2 * m_pad * K * Np,
        transcendentals=0,
        bytes_accessed=(x2d.size + w_kn.size + bias2d.size + m_pad * Np)
        * itemsize,
    )

    out = pl.pallas_call(
        _linear_kernel,
        out_shape=jax.ShapeDtypeStruct((m_pad, Np), x2d.dtype),
        grid_spec=pltpu.PrefetchScalarGridSpec(
            num_scalar_prefetch=0,
            grid=(grid_m,),
            in_specs=[
                pl.BlockSpec((tm, K), lambda i: (i, 0)),   # streamed over M
                pl.BlockSpec((K, Np), lambda i: (0, 0)),   # resident weight
                pl.BlockSpec((1, Np), lambda i: (0, 0)),   # resident bias
            ],
            out_specs=pl.BlockSpec((tm, Np), lambda i: (i, 0)),
        ),
        compiler_params=pltpu.CompilerParams(
            dimension_semantics=("parallel",),
        ),
        cost_estimate=cost,
    )(x2d, w_kn, bias2d)

    return out[:M]


def prepare_params(weight_nk, bias_n):
    """One-time packing (outside the hot path):
    PyTorch weight (N, K) -> lane-dense (K, Np); bias (N,) -> (1, Np)."""
    N, K = weight_nk.shape
    n_pad = _round_up(N, 128)
    w_kn = jnp.zeros((K, n_pad), weight_nk.dtype).at[:, :N].set(weight_nk.T)
    b2d = jnp.zeros((1, n_pad), bias_n.dtype).at[:, :N].set(bias_n)
    return w_kn, b2d


@functools.partial(jax.jit, static_argnames=("num_input", "num_output"))
def model_forward(x, w_kn, bias2d, num_input, num_output):
    """Reproduces Model.forward: reshape(-1, num_input) then Linear."""
    x2d = x.reshape(-1, num_input)
    out = linear_pallas(x2d, w_kn, bias2d)
    return out[:, :num_output]


if __name__ == "__main__":
    num_input = 32
    num_output = 16

    key = jax.random.PRNGKey(0)
    k_x, k_w, k_b, k_x2 = jax.random.split(key, 4)

    # Deterministic "PyTorch-like" init: uniform(-1/sqrt(fan_in), 1/sqrt(fan_in))
    bound = 1.0 / (num_input ** 0.5)
    weight = jax.random.uniform(k_w, (num_output, num_input),
                                minval=-bound, maxval=bound, dtype=jnp.float32)
    bias = jax.random.uniform(k_b, (num_output,),
                              minval=-bound, maxval=bound, dtype=jnp.float32)

    # Pack weight/bias ONCE (lane-dense, pre-transposed) outside the hot path.
    w_kn, bias2d = prepare_params(weight, bias)

    # Small input with leading dims to exercise reshape(-1, num_input).
    x = jax.random.normal(k_x, (2, 4, num_input), dtype=jnp.float32)
    out = model_forward(x, w_kn, bias2d, num_input, num_output)
    out = jax.block_until_ready(out)

    ref = x.reshape(-1, num_input) @ weight.T + bias
    assert out.shape == (8, num_output)
    assert jnp.allclose(out, ref, atol=1e-5, rtol=1e-5)

    # Larger M to exercise the multi-tile (grid_m > 1) pipelined path.
    x_big = jax.random.normal(k_x2, (4, 260, num_input), dtype=jnp.float32)
    out_big = jax.block_until_ready(
        model_forward(x_big, w_kn, bias2d, num_input, num_output))
    ref_big = x_big.reshape(-1, num_input) @ weight.T + bias
    assert out_big.shape == (4 * 260, num_output)
    assert jnp.allclose(out_big, ref_big, atol=1e-5, rtol=1e-5)

    print("KERNEL_OK")
</pallas_src>

<mosaic_0001>
module attributes {stable_mosaic.version = 11 : i64} {
  func.func @_linear_kernel(%arg0: i32, %arg1: memref<8x32xf32, #tpu.memory_space<vmem>>, %arg2: memref<32x128xf32, #tpu.memory_space<vmem>>, %arg3: memref<1x128xf32, #tpu.memory_space<vmem>>, %arg4: memref<8x128xf32, #tpu.memory_space<vmem>>) attributes {dimension_semantics = [#tpu.dimension_semantics<parallel>], iteration_bounds = array<i64: 1>, scalar_prefetch = 0 : i64, scratch_operands = 0 : i64, tpu.core_type = #tpu.core_type<tc>, window_params = [{transform_indices = @transform_0, window_bounds = array<i64: 8, 32>}, {pipeline_mode = #tpu.pipeline_mode<synchronous>, transform_indices = @transform_1, window_bounds = array<i64: 32, 128>}, {pipeline_mode = #tpu.pipeline_mode<synchronous>, transform_indices = @transform_2, window_bounds = array<i64: 1, 128>}, {transform_indices = @transform_3, window_bounds = array<i64: 8, 128>}]} {
    %c0 = arith.constant 0 : index
    %c0_0 = arith.constant 0 : index
    %0 = vector.load %arg1[%c0, %c0_0] : memref<8x32xf32, #tpu.memory_space<vmem>>, vector<8x32xf32>
    %c0_1 = arith.constant 0 : index
    %c0_2 = arith.constant 0 : index
    %1 = vector.load %arg2[%c0_1, %c0_2] : memref<32x128xf32, #tpu.memory_space<vmem>>, vector<32x128xf32>
    %cst = arith.constant dense<0.000000e+00> : vector<8x128xf32>
    %2 = tpu.matmul %0, %1, %cst {dimension_numbers = #tpu.dot_dimension_numbers<[1], [0], [0], [1], [0, 0, 1, 1], [], []>} : vector<8x32xf32>, vector<32x128xf32>, vector<8x128xf32> -> vector<8x128xf32>
    %c0_3 = arith.constant 0 : index
    %c0_4 = arith.constant 0 : index
    %3 = vector.load %arg3[%c0_3, %c0_4] : memref<1x128xf32, #tpu.memory_space<vmem>>, vector<1x128xf32>
    %4 = vector.broadcast %3 : vector<1x128xf32> to vector<8x128xf32>
    %5 = arith.addf %2, %4 : vector<8x128xf32>
    %c0_5 = arith.constant 0 : index
    %c0_6 = arith.constant 0 : index
    %6 = vector.load %arg4[%c0_5, %c0_6] : memref<8x128xf32, #tpu.memory_space<vmem>>, vector<8x128xf32>
    tpu.vector_store %arg4[%c0_5, %c0_6], %5 {strides = array<i32>} : memref<8x128xf32, #tpu.memory_space<vmem>>, vector<8x128xf32>,
    return
  }
  func.func @transform_0(%arg0: i32) -> (i32, i32) {
    %c0_i32 = arith.constant 0 : i32
    %c0_i32_0 = arith.constant 0 : i32
    return %arg0, %c0_i32 : i32, i32
  }
  func.func @transform_1(%arg0: i32) -> (i32, i32) {
    %c0_i32 = arith.constant 0 : i32
    %c0_i32_0 = arith.constant 0 : i32
    %c0_i32_1 = arith.constant 0 : i32
    return %c0_i32, %c0_i32_0 : i32, i32
  }
  func.func @transform_2(%arg0: i32) -> (i32, i32) {
    %c0_i32 = arith.constant 0 : i32
    %c0_i32_0 = arith.constant 0 : i32
    %c0_i32_1 = arith.constant 0 : i32
    return %c0_i32, %c0_i32_0 : i32, i32
  }
  func.func @transform_3(%arg0: i32) -> (i32, i32) {
    %c0_i32 = arith.constant 0 : i32
    %c0_i32_0 = arith.constant 0 : i32
    return %arg0, %c0_i32 : i32, i32
  }
}

</mosaic_0001>

<llo_original>
// kernel: model_forward.1
$region0: #{model_forward.1}
  #allocation0 [shape = 'u32[]', space=smem, size = 0x4, offset = 0x4, fixed_abs, tag = 'smem constant byte address 0x4 - core index']
  #allocation1 [shape = 'u32[144,128]{1,0:T(1,128)}', space=vmem, size = 0x12000, scoped, tag = 'internal scratch']
  %s0 = inlined_call_operand.hbm [shape: f32[8,32], index: 0, kind: input, shape index: {}]
  %s1 = inlined_call_operand.hbm [shape: f32[32,128], index: 1, kind: input, shape index: {}]
  %s2 = inlined_call_operand.vmem [shape: f32[1,128], index: 2, kind: input, shape index: {}]
  %s3 = inlined_call_operand.hbm [shape: f32[8,128], index: 3, kind: output, shape index: {}]
  %s4 = sld [smem:[#allocation0]]
  $region30: #{model_forward.1} parent=0
    _
  %s6 = ssub.s32 1, %s4
  %s7 = scalar_select 0, %s6, %s4
  $region1: #{model_forward.1} parent=0
    #allocation2 [shape = 'u8[4096]{0}', space=vmem, size = 0x1000, scoped, tag = 'input window, operand 0, single buffered']
    #allocation3 [shape = 's32[1]{0}', space=sflag, size = 0x4, scoped, tag = 'scoped memory for model_forward.1']
    #allocation4 [shape = 's32[1]{0}', space=sflag, size = 0x4, scoped, tag = 'scoped memory for model_forward.1']
    #allocation5 [shape = 'u8[16384]{0}', space=vmem, size = 0x4000, scoped, tag = 'input window, operand 1, single buffered']
    #allocation6 [shape = 's32[1]{0}', space=sflag, size = 0x4, scoped, tag = 'scoped memory for model_forward.1']
    #allocation7 [shape = 'u8[4096]{0}', space=vmem, size = 0x1000, scoped, tag = 'output window, operand 0, single buffered']
    %8 = vsyncpa [#allocation3], 0
    %9 = vsyncpa [#allocation6], 0
    %10 = vsyncpa [#allocation4], 0
    // Predicated region
    $region2: #{model_forward.1} parent=1 // pred_check
      _
    $region3: #{model_forward.1} parent=1 // pred_check_branch
      %12 = sbr.rel (0) target = $region5
    $region4: #{model_forward.1} parent=1 // pred_region
      %s14 = ssub.s32 128, 128
      %15 = vsyncadd [#allocation3], %s14
      %s17 = sshll.u32 [#allocation2], 4
      %s18 = int_to_ptr.vmem [resolvable:$true] %s17
      %20 = dma.hbm_to_vmem [thread:$0]  %s0, 128, %s18, [#allocation3]
    $region5: #{model_forward.1} parent=1 // pred_fallthru
      _
    // Predicated region
    $region6: #{model_forward.1} parent=1 // pred_check
      _
    $region7: #{model_forward.1} parent=1 // pred_check_branch
      %22 = sbr.rel (0) target = $region9
    $region8: #{model_forward.1} parent=1 // pred_region
      %s24 = ssub.s32 512, 512
      %25 = vsyncadd [#allocation6], %s24
      %s26 = sshll.u32 [#allocation5], 4
      %s27 = int_to_ptr.vmem [resolvable:$true] %s26
      %32 = dma.hbm_to_vmem [thread:$0]  %s1, 512, %s27, [#allocation6], 128, 128, 8
    $region9: #{model_forward.1} parent=1 // pred_fallthru
      _
    // Predicated region
    $region10: #{model_forward.1} parent=1 // pred_check
      _
    $region11: #{model_forward.1} parent=1 // pred_check_branch
      %34 = sbr.rel (0) target = $region13
    $region12: #{model_forward.1} parent=1 // pred_region
      _
    $region13: #{model_forward.1} parent=1 // pred_fallthru
      _
    // Predicated region
    $region14: #{model_forward.1} parent=1 // pred_check
      _
    $region15: #{model_forward.1} parent=1 // pred_check_branch
      %36 = sbr.rel (0) target = $region17
    $region16: #{model_forward.1} parent=1 // pred_region
      %37 = dma.done [#allocation3], 128
    $region17: #{model_forward.1} parent=1 // pred_fallthru
      _
    // Predicated region
    $region18: #{model_forward.1} parent=1 // pred_check
      _
    $region19: #{model_forward.1} parent=1 // pred_check_branch
      %39 = sbr.rel (0) target = $region21
    $region20: #{model_forward.1} parent=1 // pred_region
      %40 = dma.done [#allocation6], 512
    $region21: #{model_forward.1} parent=1 // pred_fallthru
      _
    %v41 = vld [vmem:[#allocation2] sm:$0xff]
    %v42 = vld [vmem:[#allocation5] sm:$0xff]
    %v43 = vld [vmem:[#allocation5 + $0x8] sm:$0xff]
    %v44 = vld [vmem:[#allocation5 + $0x10] sm:$0xff]
    %v45 = vld [vmem:[#allocation5 + $0x18] sm:$0xff]
    %v46 = vld [vmem:[%s2] sm:$0x1]
    %v48 = vlaneseq
    %v49 = vshrl.u32 %v48, 7
    %v50 = vsub.s32 0, %v49
    %v51 = vrot.slane %v46, %v50
    %vm53 = vcmask 261120
    %v55 = vsel %vm53, %v41, 0
    %57 = vmatprep.subr.mxu0 0.0
    %58 = vmatpush1.msra.mxu0 0.0
    %59 = vmatprep.subr.mxu0 0.0
    %60 = vmatpush1.msra.mxu0 0.0
    %61 = vmatprep.subr.mxu0 0.0
    %62 = vmatpush1.msra.mxu0 0.0
    %63 = vmatprep.subr.mxu0 0.0
    %64 = vmatpush1.msra.mxu0 0.0
    %65 = vmatprep.subr.mxu0 0.0
    %66 = vmatpush1.msra.mxu0 0.0
    %67 = vmatprep.subr.mxu0 0.0
    %68 = vmatpush1.msra.mxu0 0.0
    %69 = vmatprep.subr.mxu0 0.0
    %70 = vmatpush1.msra.mxu0 0.0
    %71 = vmatprep.subr.mxu0 0.0
    %72 = vmatpush1.msra.mxu0 0.0
    %73 = vmatprep.subr.mxu0 0.0
    %74 = vmatpush1.msra.mxu0 0.0
    %75 = vmatprep.subr.mxu0 0.0
    %76 = vmatpush1.msra.mxu0 0.0
    %77 = vmatprep.subr.mxu0 0.0
    %78 = vmatpush1.msra.mxu0 0.0
    %79 = vmatprep.subr.mxu0 0.0
    %80 = vmatpush1.msra.mxu0 0.0
    %81 = vmatprep.subr.mxu0 0.0
    %82 = vmatpush1.msra.mxu0 %v45
    %83 = vmatprep.subr.mxu0 0.0
    %84 = vmatpush1.msra.mxu0 %v44
    %85 = vmatprep.subr.mxu0 0.0
    %86 = vmatpush1.msra.mxu0 %v43
    %87 = vmatprep.subr.mxu0 0.0
    %88 = vmatpush1.msra.mxu0 %v42
    %89 = vmatprep.subr.mxu0 0.0
    %90 = vmatpush2.msra.mxu0 0.0
    %91 = vmatprep.subr.mxu0 0.0
    %92 = vmatpush2.msra.mxu0 0.0
    %93 = vmatprep.subr.mxu0 0.0
    %94 = vmatpush2.msra.mxu0 0.0
    %95 = vmatprep.subr.mxu0 0.0
    %96 = vmatpush2.msra.mxu0 0.0
    %97 = vmatprep.subr.mxu0 0.0
    %98 = vmatpush2.msra.mxu0 0.0
    %99 = vmatprep.subr.mxu0 0.0
    %100 = vmatpush2.msra.mxu0 0.0
    %101 = vmatprep.subr.mxu0 0.0
    %102 = vmatpush2.msra.mxu0 0.0
    %103 = vmatprep.subr.mxu0 0.0
    %104 = vmatpush2.msra.mxu0 0.0
    %105 = vmatprep.subr.mxu0 0.0
    %106 = vmatpush2.msra.mxu0 0.0
    %107 = vmatprep.subr.mxu0 0.0
    %108 = vmatpush2.msra.mxu0 0.0
    %109 = vmatprep.subr.mxu0 0.0
    %110 = vmatpush2.msra.mxu0 0.0
    %111 = vmatprep.subr.mxu0 0.0
    %112 = vmatpush2.msra.mxu0 0.0
    %113 = vmatprep.subr.mxu0 0.0
    %114 = vmatpush2.msra.mxu0 0.0
    %115 = vmatprep.subr.mxu0 0.0
    %116 = vmatpush2.msra.mxu0 0.0
    %117 = vmatprep.subr.mxu0 0.0
    %118 = vmatpush2.msra.mxu0 0.0
    %119 = vmatprep.subr.mxu0 0.0
    %120 = vmatpush2.msra.mxu0 0.0
    %121 = vmatprep.mubr.f32.mxu0 0.0
    %122 = vmatmul.mubr.f32.gmra.mxu0 %v55
    %v123 = vpop.f32.mrf.mxu0
    %v124 = vadd.f32 %v51, %v123
    %v125 = vpop.f32.mrf.mxu0
    %126 = vdwg.mxu0
    %127 = vst [vmem:[#allocation7] sm:$0xff] %v124
    // Predicated region
    $region22: #{model_forward.1} parent=1 // pred_check
      _
    $region23: #{model_forward.1} parent=1 // pred_check_branch
      %129 = sbr.rel (0) target = $region25
    $region24: #{model_forward.1} parent=1 // pred_region
      %s131 = ssub.s32 128, 128
      %132 = vsyncadd [#allocation4], %s131
      %s134 = sshll.u32 [#allocation7], 4
      %s135 = int_to_ptr.vmem [resolvable:$true] %s134
      %137 = dma.vmem_to_hbm [thread:$0]  %s135, 128, %s3, [#allocation4]
    $region25: #{model_forward.1} parent=1 // pred_fallthru
      _
    // Predicated region
    $region26: #{model_forward.1} parent=1 // pred_check
      _
    $region27: #{model_forward.1} parent=1 // pred_check_branch
      %139 = sbr.rel (0) target = $region29
    $region28: #{model_forward.1} parent=1 // pred_region
      %140 = dma.done [#allocation4], 128
    $region29: #{model_forward.1} parent=1 // pred_fallthru
      _
    %141 = vsyncpa [#allocation3], 1
    %142 = vsyncpa [#allocation6], 1
    %143 = vsyncpa [#allocation4], 1

</llo_original>
